<compile_context>
chip_gen: v5e
topology: v5e:2x2
jax: 0.10.0
libtpu: 0.0.40
codegen_flags: <defaults>
</compile_context>

<pallas_src>
import functools

import jax
import jax.numpy as jnp
import numpy as np
from jax import lax
from jax.experimental import pallas as pl
from jax.experimental.pallas import tpu as pltpu


def _mha_kernel(xq_ref, xkv_ref, wqkv_ref, bqkv_ref, wproj_ref, bproj_ref, o_ref,
                *, num_heads, scale):
    H = num_heads
    xq = xq_ref[0]                       # (tq, E)  bf16
    xkv = xkv_ref[0]                     # (N,  E)  bf16
    tq, E = xq.shape
    n_kv = xkv.shape[0]

    wq = wqkv_ref[0]                     # (H, E, D) bf16
    wk = wqkv_ref[1]
    wv = wqkv_ref[2]
    bq = bqkv_ref[0]                     # (H, 1, D) f32
    bk = bqkv_ref[1]
    bv = bqkv_ref[2]

    # Heads on a leading batch axis -> batched matmuls, no lane-dim slicing.
    xq_b = jnp.broadcast_to(xq[None], (H, tq, E))
    xkv_b = jnp.broadcast_to(xkv[None], (H, n_kv, E))

    proj_dims = (((2,), (1,)), ((0,), (0,)))     # contract E, batch over H
    q = lax.dot_general(xq_b, wq, dimension_numbers=proj_dims,
                        preferred_element_type=jnp.float32) + bq      # (H, tq, D)
    k = lax.dot_general(xkv_b, wk, dimension_numbers=proj_dims,
                        preferred_element_type=jnp.float32) + bk      # (H, N,  D)
    v = lax.dot_general(xkv_b, wv, dimension_numbers=proj_dims,
                        preferred_element_type=jnp.float32) + bv      # (H, N,  D)

    # Fold the 1/sqrt(D) scale into q (cheap) and feed the MXU bf16 operands.
    q = (q * scale).astype(jnp.bfloat16)
    k = k.astype(jnp.bfloat16)
    v = v.astype(jnp.bfloat16)

    # Scores (H, tq, N): contract the last dims -> no materialized K transpose.
    s = lax.dot_general(q, k, dimension_numbers=(((2,), (2,)), ((0,), (0,))),
                        preferred_element_type=jnp.float32)

    # Numerically stable softmax statistics in f32; normalization is deferred
    # until after attn @ v (smaller tensor) and uses the EUP reciprocal.
    m = jnp.max(s, axis=-1, keepdims=True)                    # (H, tq, 1)
    p = jnp.exp(s - m)                                        # (H, tq, N) f32
    l = jnp.sum(p, axis=-1, keepdims=True)                    # (H, tq, 1)

    o = lax.dot_general(p.astype(jnp.bfloat16), v,
                        dimension_numbers=(((2,), (1,)), ((0,), (0,))),
                        preferred_element_type=jnp.float32)   # (H, tq, D)
    o = o * pl.reciprocal(l, approx=True)

    # Fused output projection: per-head (tq, D) @ (D, E) accumulated over heads —
    # no head concat on the lane dimension.
    y_h = lax.dot_general(o.astype(jnp.bfloat16), wproj_ref[...],
                          dimension_numbers=(((2,), (1,)), ((0,), (0,))),
                          preferred_element_type=jnp.float32)  # (H, tq, E)
    y = jnp.sum(y_h, axis=0) + bproj_ref[...]                  # (tq, E)
    o_ref[0] = y.astype(o_ref.dtype)


def multi_head_attention(x, w_qkv, b_qkv, w_proj, b_proj, *, num_heads,
                         q_block=None, compute_dtype=jnp.bfloat16):
    """x: (B, N, E); w_qkv: (E, 3E); b_qkv: (3E,); w_proj: (E, E); b_proj: (E,)."""
    B, N, E = x.shape
    H = num_heads
    assert E % H == 0, "embed_dim must be divisible by num_heads"
    D = E // H
    scale = D ** (-0.5)

    tq = N if q_block is None else q_block
    assert N % tq == 0 and (tq % 8 == 0 or tq == N)
    nq = N // tq

    # Head-major weight layouts so the kernel never touches the lane dimension:
    #   w_qkv (E, 3E) -> (3, H, E, D); b_qkv (3E,) -> (3, H, 1, D); w_proj -> (H, D, E)
    w_qkv_h = w_qkv.reshape(E, 3, H, D).transpose(1, 2, 0, 3).astype(compute_dtype)
    b_qkv_h = b_qkv.reshape(3, H, 1, D).astype(jnp.float32)
    w_proj_h = w_proj.reshape(H, D, E).astype(compute_dtype)
    b_proj_2d = b_proj.reshape(1, E).astype(jnp.float32)
    x_c = x.astype(compute_dtype)         # bf16 MXU inputs, halves HBM traffic

    kernel = functools.partial(_mha_kernel, num_heads=H, scale=scale)

    flops = int(2 * B * N * E * 3 * E       # qkv projection
                + 4 * B * H * N * N * D     # scores + attn @ v
                + 2 * B * N * E * E)        # output projection
    transcendentals = int(B * H * N * N)    # exp
    bytes_accessed = int(x_c.size * x_c.dtype.itemsize * (1 + nq)
                         + w_qkv_h.size * w_qkv_h.dtype.itemsize
                         + w_proj_h.size * w_proj_h.dtype.itemsize
                         + b_qkv_h.size * 4 + b_proj_2d.size * 4
                         + B * N * E * x.dtype.itemsize)

    return pl.pallas_call(
        kernel,
        out_shape=jax.ShapeDtypeStruct((B, N, E), x.dtype),
        grid_spec=pltpu.PrefetchScalarGridSpec(
            num_scalar_prefetch=0,
            grid=(B, nq),
            in_specs=[
                pl.BlockSpec((1, tq, E), lambda b, qi: (b, qi, 0)),       # x (query rows)
                pl.BlockSpec((1, N, E), lambda b, qi: (b, 0, 0)),         # x (kv rows)
                pl.BlockSpec((3, H, E, D), lambda b, qi: (0, 0, 0, 0)),   # w_qkv (head-major)
                pl.BlockSpec((3, H, 1, D), lambda b, qi: (0, 0, 0, 0)),   # b_qkv
                pl.BlockSpec((H, D, E), lambda b, qi: (0, 0, 0)),         # w_proj (head-major)
                pl.BlockSpec((1, E), lambda b, qi: (0, 0)),               # b_proj
            ],
            out_specs=pl.BlockSpec((1, tq, E), lambda b, qi: (b, qi, 0)),
        ),
        compiler_params=pltpu.CompilerParams(
            dimension_semantics=("parallel", "parallel")),
        cost_estimate=pl.CostEstimate(flops=flops,
                                      transcendentals=transcendentals,
                                      bytes_accessed=bytes_accessed),
    )(x_c, x_c, w_qkv_h, b_qkv_h, w_proj_h, b_proj_2d)


def _reference(x, w_qkv, b_qkv, w_proj, b_proj, num_heads):
    """Pure-JAX f32 reference matching the PyTorch forward (dropout = identity)."""
    B, N, E = x.shape
    D = E // num_heads
    scale = D ** (-0.5)
    qkv = x @ w_qkv + b_qkv                                      # (B, N, 3E)
    q, k, v = jnp.split(qkv, 3, axis=-1)
    def heads(t):  # b n (h d) -> b h n d
        return t.reshape(B, N, num_heads, D).transpose(0, 2, 1, 3)
    q, k, v = heads(q), heads(k), heads(v)
    dots = jnp.einsum("bhnd,bhmd->bhnm", q, k) * scale
    attn = jax.nn.softmax(dots, axis=-1)
    out = jnp.einsum("bhnm,bhmd->bhnd", attn, v)
    out = out.transpose(0, 2, 1, 3).reshape(B, N, E)
    return out @ w_proj + b_proj


if __name__ == "__main__":
    B, N, E = 2, 8, 32
    num_heads = 4

    key = jax.random.PRNGKey(0)
    kx, kw1, kb1, kw2, kb2 = jax.random.split(key, 5)

    x = jax.random.normal(kx, (B, N, E), dtype=jnp.float32)
    # deterministic parameter init (PyTorch-shape-equivalent, stored as (in, out))
    w_qkv = jax.random.normal(kw1, (E, 3 * E), dtype=jnp.float32) * 0.05
    b_qkv = jax.random.normal(kb1, (3 * E,), dtype=jnp.float32) * 0.05
    w_proj = jax.random.normal(kw2, (E, E), dtype=jnp.float32) * 0.05
    b_proj = jax.random.normal(kb2, (E,), dtype=jnp.float32) * 0.05

    y = multi_head_attention(x, w_qkv, b_qkv, w_proj, b_proj, num_heads=num_heads)
    y = jax.block_until_ready(y)

    y_ref = _reference(x, w_qkv, b_qkv, w_proj, b_proj, num_heads)
    # bf16 MXU operands (f32 accumulation / f32 softmax) -> looser tolerance.
    np.testing.assert_allclose(np.asarray(y), np.asarray(y_ref),
                               rtol=2e-2, atol=2e-2)
    print("KERNEL_OK")
</pallas_src>

<mosaic_0001>
module attributes {stable_mosaic.version = 11 : i64} {
  func.func @_mha_kernel(%arg0: i32, %arg1: i32, %arg2: memref<1x8x32xbf16, #tpu.memory_space<vmem>>, %arg3: memref<1x8x32xbf16, #tpu.memory_space<vmem>>, %arg4: memref<3x4x32x8xbf16, #tpu.memory_space<vmem>>, %arg5: memref<3x4x1x8xf32, #tpu.memory_space<vmem>>, %arg6: memref<4x8x32xbf16, #tpu.memory_space<vmem>>, %arg7: memref<1x32xf32, #tpu.memory_space<vmem>>, %arg8: memref<1x8x32xf32, #tpu.memory_space<vmem>>) attributes {dimension_semantics = [#tpu.dimension_semantics<parallel>, #tpu.dimension_semantics<parallel>], iteration_bounds = array<i64: 2, 1>, scalar_prefetch = 0 : i64, scratch_operands = 0 : i64, tpu.core_type = #tpu.core_type<tc>, window_params = [{transform_indices = @transform_0, window_bounds = array<i64: 1, 8, 32>}, {transform_indices = @transform_1, window_bounds = array<i64: 1, 8, 32>}, {pipeline_mode = #tpu.pipeline_mode<synchronous>, transform_indices = @transform_2, window_bounds = array<i64: 3, 4, 32, 8>}, {pipeline_mode = #tpu.pipeline_mode<synchronous>, transform_indices = @transform_3, window_bounds = array<i64: 3, 4, 1, 8>}, {pipeline_mode = #tpu.pipeline_mode<synchronous>, transform_indices = @transform_4, window_bounds = array<i64: 4, 8, 32>}, {pipeline_mode = #tpu.pipeline_mode<synchronous>, transform_indices = @transform_5, window_bounds = array<i64: 1, 32>}, {transform_indices = @transform_6, window_bounds = array<i64: 1, 8, 32>}]} {
    %c0 = arith.constant 0 : index
    %c0_0 = arith.constant 0 : index
    %c0_1 = arith.constant 0 : index
    %0 = vector.load %arg2[%c0, %c0_0, %c0_1] : memref<1x8x32xbf16, #tpu.memory_space<vmem>>, vector<1x8x32xbf16>
    %1 = vector.shape_cast %0 : vector<1x8x32xbf16> to vector<8x32xbf16>
    %c0_2 = arith.constant 0 : index
    %c0_3 = arith.constant 0 : index
    %c0_4 = arith.constant 0 : index
    %2 = vector.load %arg3[%c0_2, %c0_3, %c0_4] : memref<1x8x32xbf16, #tpu.memory_space<vmem>>, vector<1x8x32xbf16>
    %3 = vector.shape_cast %2 : vector<1x8x32xbf16> to vector<8x32xbf16>
    %c0_5 = arith.constant 0 : index
    %c0_6 = arith.constant 0 : index
    %c0_7 = arith.constant 0 : index
    %c0_8 = arith.constant 0 : index
    %4 = vector.load %arg4[%c0_5, %c0_6, %c0_7, %c0_8] : memref<3x4x32x8xbf16, #tpu.memory_space<vmem>>, vector<1x4x32x8xbf16>
    %5 = vector.shape_cast %4 : vector<1x4x32x8xbf16> to vector<4x32x8xbf16>
    %c1 = arith.constant 1 : index
    %c0_9 = arith.constant 0 : index
    %c0_10 = arith.constant 0 : index
    %c0_11 = arith.constant 0 : index
    %6 = vector.load %arg4[%c1, %c0_9, %c0_10, %c0_11] : memref<3x4x32x8xbf16, #tpu.memory_space<vmem>>, vector<1x4x32x8xbf16>
    %7 = vector.shape_cast %6 : vector<1x4x32x8xbf16> to vector<4x32x8xbf16>
    %c2 = arith.constant 2 : index
    %c0_12 = arith.constant 0 : index
    %c0_13 = arith.constant 0 : index
    %c0_14 = arith.constant 0 : index
    %8 = vector.load %arg4[%c2, %c0_12, %c0_13, %c0_14] : memref<3x4x32x8xbf16, #tpu.memory_space<vmem>>, vector<1x4x32x8xbf16>
    %9 = vector.shape_cast %8 : vector<1x4x32x8xbf16> to vector<4x32x8xbf16>
    %c0_15 = arith.constant 0 : index
    %c0_16 = arith.constant 0 : index
    %c0_17 = arith.constant 0 : index
    %c0_18 = arith.constant 0 : index
    %10 = vector.load %arg5[%c0_15, %c0_16, %c0_17, %c0_18] : memref<3x4x1x8xf32, #tpu.memory_space<vmem>>, vector<1x4x1x8xf32>
    %11 = vector.shape_cast %10 : vector<1x4x1x8xf32> to vector<4x1x8xf32>
    %c1_19 = arith.constant 1 : index
    %c0_20 = arith.constant 0 : index
    %c0_21 = arith.constant 0 : index
    %c0_22 = arith.constant 0 : index
    %12 = vector.load %arg5[%c1_19, %c0_20, %c0_21, %c0_22] : memref<3x4x1x8xf32, #tpu.memory_space<vmem>>, vector<1x4x1x8xf32>
    %13 = vector.shape_cast %12 : vector<1x4x1x8xf32> to vector<4x1x8xf32>
    %c2_23 = arith.constant 2 : index
    %c0_24 = arith.constant 0 : index
    %c0_25 = arith.constant 0 : index
    %c0_26 = arith.constant 0 : index
    %14 = vector.load %arg5[%c2_23, %c0_24, %c0_25, %c0_26] : memref<3x4x1x8xf32, #tpu.memory_space<vmem>>, vector<1x4x1x8xf32>
    %15 = vector.shape_cast %14 : vector<1x4x1x8xf32> to vector<4x1x8xf32>
    %16 = vector.shape_cast %1 : vector<8x32xbf16> to vector<1x8x32xbf16>
    %17 = vector.shape_cast %16 : vector<1x8x32xbf16> to vector<1x8x32xbf16>
    %18 = vector.broadcast %17 : vector<1x8x32xbf16> to vector<4x8x32xbf16>
    %19 = vector.shape_cast %3 : vector<8x32xbf16> to vector<1x8x32xbf16>
    %20 = vector.shape_cast %19 : vector<1x8x32xbf16> to vector<1x8x32xbf16>
    %21 = vector.broadcast %20 : vector<1x8x32xbf16> to vector<4x8x32xbf16>
    %cst = arith.constant dense<0.000000e+00> : vector<4x8x8xf32>
    %22 = tpu.matmul %18, %5, %cst {dimension_numbers = #tpu.dot_dimension_numbers<[2], [1], [1], [2], [0, 0, 0, 1, 1, 2], [0], [0]>} : vector<4x8x32xbf16>, vector<4x32x8xbf16>, vector<4x8x8xf32> -> vector<4x8x8xf32>
    %23 = vector.broadcast %11 : vector<4x1x8xf32> to vector<4x8x8xf32>
    %24 = arith.addf %22, %23 : vector<4x8x8xf32>
    %cst_27 = arith.constant dense<0.000000e+00> : vector<4x8x8xf32>
    %25 = tpu.matmul %21, %7, %cst_27 {dimension_numbers = #tpu.dot_dimension_numbers<[2], [1], [1], [2], [0, 0, 0, 1, 1, 2], [0], [0]>} : vector<4x8x32xbf16>, vector<4x32x8xbf16>, vector<4x8x8xf32> -> vector<4x8x8xf32>
    %26 = vector.broadcast %13 : vector<4x1x8xf32> to vector<4x8x8xf32>
    %27 = arith.addf %25, %26 : vector<4x8x8xf32>
    %cst_28 = arith.constant dense<0.000000e+00> : vector<4x8x8xf32>
    %28 = tpu.matmul %21, %9, %cst_28 {dimension_numbers = #tpu.dot_dimension_numbers<[2], [1], [1], [2], [0, 0, 0, 1, 1, 2], [0], [0]>} : vector<4x8x32xbf16>, vector<4x32x8xbf16>, vector<4x8x8xf32> -> vector<4x8x8xf32>
    %29 = vector.broadcast %15 : vector<4x1x8xf32> to vector<4x8x8xf32>
    %30 = arith.addf %28, %29 : vector<4x8x8xf32>
    %cst_29 = arith.constant 0.353553385 : f32
    %31 = vector.broadcast %cst_29 : f32 to vector<4x8x8xf32>
    %32 = arith.mulf %24, %31 : vector<4x8x8xf32>
    %33 = arith.truncf %32 : vector<4x8x8xf32> to vector<4x8x8xbf16>
    %34 = arith.truncf %27 : vector<4x8x8xf32> to vector<4x8x8xbf16>
    %35 = arith.truncf %30 : vector<4x8x8xf32> to vector<4x8x8xbf16>
    %cst_30 = arith.constant dense<0.000000e+00> : vector<4x8x8xf32>
    %36 = tpu.matmul %33, %34, %cst_30 {dimension_numbers = #tpu.dot_dimension_numbers<[2], [2], [1], [1], [0, 0, 0, 1, 1, 1], [0], [0]>} : vector<4x8x8xbf16>, vector<4x8x8xbf16>, vector<4x8x8xf32> -> vector<4x8x8xf32>
    %cst_31 = arith.constant dense<0xFF800000> : vector<4x8xf32>
    %37 = vector.multi_reduction <maximumf>, %36, %cst_31 [2] : vector<4x8x8xf32> to vector<4x8xf32>
    %38 = vector.shape_cast %37 : vector<4x8xf32> to vector<4x8x1xf32>
    %39 = vector.broadcast %38 : vector<4x8x1xf32> to vector<4x8x8xf32>
    %40 = arith.subf %36, %39 : vector<4x8x8xf32>
    %41 = math.exp %40 : vector<4x8x8xf32>
    %cst_32 = arith.constant dense<0.000000e+00> : vector<4x8xf32>
    %42 = vector.multi_reduction <add>, %41, %cst_32 [2] : vector<4x8x8xf32> to vector<4x8xf32>
    %43 = vector.shape_cast %42 : vector<4x8xf32> to vector<4x8x1xf32>
    %44 = arith.truncf %41 : vector<4x8x8xf32> to vector<4x8x8xbf16>
    %cst_33 = arith.constant dense<0.000000e+00> : vector<4x8x8xf32>
    %45 = tpu.matmul %44, %35, %cst_33 {dimension_numbers = #tpu.dot_dimension_numbers<[2], [1], [1], [2], [0, 0, 0, 1, 1, 2], [0], [0]>} : vector<4x8x8xbf16>, vector<4x8x8xbf16>, vector<4x8x8xf32> -> vector<4x8x8xf32>
    %46 = tpu.reciprocal %43 {approx = true} : vector<4x8x1xf32> -> vector<4x8x1xf32>
    %47 = vector.broadcast %46 : vector<4x8x1xf32> to vector<4x8x8xf32>
    %48 = arith.mulf %45, %47 : vector<4x8x8xf32>
    %49 = arith.truncf %48 : vector<4x8x8xf32> to vector<4x8x8xbf16>
    %c0_34 = arith.constant 0 : index
    %c0_35 = arith.constant 0 : index
    %c0_36 = arith.constant 0 : index
    %50 = vector.load %arg6[%c0_34, %c0_35, %c0_36] : memref<4x8x32xbf16, #tpu.memory_space<vmem>>, vector<4x8x32xbf16>
    %cst_37 = arith.constant dense<0.000000e+00> : vector<4x8x32xf32>
    %51 = tpu.matmul %49, %50, %cst_37 {dimension_numbers = #tpu.dot_dimension_numbers<[2], [1], [1], [2], [0, 0, 0, 1, 1, 2], [0], [0]>} : vector<4x8x8xbf16>, vector<4x8x32xbf16>, vector<4x8x32xf32> -> vector<4x8x32xf32>
    %cst_38 = arith.constant dense<0.000000e+00> : vector<8x32xf32>
    %52 = vector.multi_reduction <add>, %51, %cst_38 [0] : vector<4x8x32xf32> to vector<8x32xf32>
    %c0_39 = arith.constant 0 : index
    %c0_40 = arith.constant 0 : index
    %53 = vector.load %arg7[%c0_39, %c0_40] : memref<1x32xf32, #tpu.memory_space<vmem>>, vector<1x32xf32>
    %54 = vector.broadcast %53 : vector<1x32xf32> to vector<8x32xf32>
    %55 = arith.addf %52, %54 : vector<8x32xf32>
    %c0_41 = arith.constant 0 : index
    %c0_42 = arith.constant 0 : index
    %c0_43 = arith.constant 0 : index
    %56 = vector.load %arg8[%c0_41, %c0_42, %c0_43] : memref<1x8x32xf32, #tpu.memory_space<vmem>>, vector<1x8x32xf32>
    %57 = vector.shape_cast %56 : vector<1x8x32xf32> to vector<8x32xf32>
    %58 = vector.shape_cast %55 : vector<8x32xf32> to vector<1x8x32xf32>
    tpu.vector_store %arg8[%c0_41, %c0_42, %c0_43], %58 {strides = array<i32>} : memref<1x8x32xf32, #tpu.memory_space<vmem>>, vector<1x8x32xf32>,
    return
  }
  func.func @transform_0(%arg0: i32, %arg1: i32) -> (i32, i32, i32) {
    %c0_i32 = arith.constant 0 : i32
    %c0_i32_0 = arith.constant 0 : i32
    return %arg0, %arg1, %c0_i32 : i32, i32, i32
  }
  func.func @transform_1(%arg0: i32, %arg1: i32) -> (i32, i32, i32) {
    %c0_i32 = arith.constant 0 : i32
    %c0_i32_0 = arith.constant 0 : i32
    %c0_i32_1 = arith.constant 0 : i32
    return %arg0, %c0_i32, %c0_i32_0 : i32, i32, i32
  }
  func.func @transform_2(%arg0: i32, %arg1: i32) -> (i32, i32, i32, i32) {
    %c0_i32 = arith.constant 0 : i32
    %c0_i32_0 = arith.constant 0 : i32
    %c0_i32_1 = arith.constant 0 : i32
    %c0_i32_2 = arith.constant 0 : i32
    %c0_i32_3 = arith.constant 0 : i32
    return %c0_i32, %c0_i32_0, %c0_i32_1, %c0_i32_2 : i32, i32, i32, i32
  }
  func.func @transform_3(%arg0: i32, %arg1: i32) -> (i32, i32, i32, i32) {
    %c0_i32 = arith.constant 0 : i32
    %c0_i32_0 = arith.constant 0 : i32
    %c0_i32_1 = arith.constant 0 : i32
    %c0_i32_2 = arith.constant 0 : i32
    %c0_i32_3 = arith.constant 0 : i32
    return %c0_i32, %c0_i32_0, %c0_i32_1, %c0_i32_2 : i32, i32, i32, i32
  }
  func.func @transform_4(%arg0: i32, %arg1: i32) -> (i32, i32, i32) {
    %c0_i32 = arith.constant 0 : i32
    %c0_i32_0 = arith.constant 0 : i32
    %c0_i32_1 = arith.constant 0 : i32
    %c0_i32_2 = arith.constant 0 : i32
    return %c0_i32, %c0_i32_0, %c0_i32_1 : i32, i32, i32
  }
  func.func @transform_5(%arg0: i32, %arg1: i32) -> (i32, i32) {
    %c0_i32 = arith.constant 0 : i32
    %c0_i32_0 = arith.constant 0 : i32
    %c0_i32_1 = arith.constant 0 : i32
    return %c0_i32, %c0_i32_0 : i32, i32
  }
  func.func @transform_6(%arg0: i32, %arg1: i32) -> (i32, i32, i32) {
    %c0_i32 = arith.constant 0 : i32
    %c0_i32_0 = arith.constant 0 : i32
    return %arg0, %arg1, %c0_i32 : i32, i32, i32
  }
}

</mosaic_0001>

<llo_original>
// kernel: tpu_custom_call.1
$region0: #{tpu_custom_call.1}
  #allocation0 [shape = 'u32[]', space=smem, size = 0x4, offset = 0x4, fixed_abs, tag = 'smem constant byte address 0x4 - core index']
  #allocation1 [shape = 'u32[72,128]{1,0:T(1,128)}', space=vmem, size = 0x9000, scoped, tag = 'internal scratch']
  %s0 = inlined_call_operand.vmem [shape: bf16[2,8,32], index: 0, kind: input, shape index: {}]
  %s1 = inlined_call_operand.vmem [shape: bf16[2,8,32], index: 1, kind: input, shape index: {}]
  %s2 = inlined_call_operand.vmem [shape: bf16[3,4,32,8], index: 2, kind: input, shape index: {}]
  %s3 = inlined_call_operand.vmem [shape: f32[3,4,1,8], index: 3, kind: input, shape index: {}]
  %s4 = inlined_call_operand.vmem [shape: bf16[4,8,32], index: 4, kind: input, shape index: {}]
  %s5 = inlined_call_operand.vmem [shape: f32[1,32], index: 5, kind: input, shape index: {}]
  %s6 = inlined_call_operand.hbm [shape: f32[2,8,32], index: 6, kind: output, shape index: {}]
  %s7 = sld [smem:[#allocation0]]
  $region57: #{tpu_custom_call.1} parent=0
    _
  %s9 = ssub.s32 1, %s7
  %s10 = scalar_select 0, %s9, %s7
  $region1: #{tpu_custom_call.1} parent=0
    #allocation2 [shape = 'u8[8192]{0}', space=vmem, size = 0x2000, scoped, tag = 'output window, operand 0']
    #allocation3 [shape = 's32[2]{0}', space=sflag, size = 0x8, scoped, tag = 'scoped memory for tpu_custom_call.1']
    %11 = vsyncpa [#allocation3], 0
    %s12 = scalar_lea.sflag [#allocation3], 1
    %13 = vsyncpa %s12, 0
    loop: start=0, step=1, limit=4
    $region2: #{tpu_custom_call.1} parent=1 // loop_pre_header
      _
    $region3: #{tpu_custom_call.1} parent=1 // loop_header
      %s15 = sphi 0, %s19
      %p16 = scmp.ge.s32.totalorder %s15, 4
      %s22 = sphi 0, %s34
      %s23 = sphi 0, %s30
      %s24 = sphi 0, %s22
      %s25 = sphi 0, %s23
      %s26 = sphi 0, %s24
      %s27 = sphi 0, %s25
      %s39 = sphi 0, %s41
      %s42 = sphi 0, %s39
      %s43 = sphi 0, %s42
      %s59 = sphi 0, %s43
      %s65 = sphi 0, %s67
      %s68 = sphi 0, %s65
      %s69 = sphi 0, %s68
      %s85 = sphi 0, %s69
      %s89 = sphi 0, %s89
      %s91 = sphi 0, %s89
      %s92 = sphi 0, %s91
      %s106 = sphi 0, %s92
      %s110 = sphi 0, %s110
      %s112 = sphi 0, %s110
      %s113 = sphi 0, %s112
      %s127 = sphi 0, %s113
      %s131 = sphi 0, %s131
      %s133 = sphi 0, %s131
      %s134 = sphi 0, %s133
      %s148 = sphi 0, %s134
      %s152 = sphi 0, %s152
      %s154 = sphi 0, %s152
      %s155 = sphi 0, %s154
      %s169 = sphi 0, %s155
      %s177 = sphi 0, %s179
      %s180 = sphi 0, %s177
      %s181 = sphi 0, %s180
      %s197 = sphi 0, %s181
    $region4: #{tpu_custom_call.1} parent=1 // loop_header_branch
      %18 = sbr.rel (%p16) target = $region8
    $region5: #{tpu_custom_call.1} parent=1 // loop_body
      %s20 = ssub.s32 %s15, 1
      %s21 = ssub.s32 %s15, 2
      %s28 = sadd.s32 1, %s23
      %p29 = scmp.ge.s32.totalorder %s28, 1
      %s30 = scalar_select %p29, 0, %s28
      %s31 = sadd.s32 1, %s22
      %s32 = scalar_select %p29, %s31, %s22
      %p33 = scmp.ge.s32.totalorder %s32, 2
      %s34 = scalar_select %p33, 0, %s32
      %s35 = ssub.s32 %s22, %s34
      %s36 = ssub.s32 %s23, %s30
      %s37 = sor.u32 %s35, %s36
      %p38 = scmp.eq.s32.totalorder %s37, 0
      %s40 = sadd.s32 %s39, 1
      %s41 = scalar_select %p38, %s39, %s40
      %p44 = pneg %p38
      %p45 = scmp.eq.s32.totalorder %s15, 1
      %p46 = por %p44, %p45
      %p47 = scmp.ne.s32.totalorder %s39, %s42
      %p48 = scmp.eq.s32.totalorder %s15, 0
      %p49 = por %p47, %p48
      %p50 = scmp.ne.s32.totalorder %s39, %s42
      %p51 = scmp.eq.s32.totalorder %s20, 1
      %p52 = por %p50, %p51
      %p53 = scmp.ne.s32.totalorder %s42, %s43
      %p54 = scmp.eq.s32.totalorder %s20, 0
      %p55 = por %p53, %p54
      %p56 = scmp.ne.s32.totalorder %s42, %s43
      %p57 = scmp.eq.s32.totalorder %s21, 1
      %p58 = por %p56, %p57
      %p60 = scmp.ne.s32.totalorder %s43, %s59
      %p61 = scmp.eq.s32.totalorder %s21, 0
      %p62 = por %p60, %p61
      %s63 = ssub.s32 %s22, %s34
      %p64 = scmp.eq.s32.totalorder %s63, 0
      %s66 = sadd.s32 %s65, 1
      %s67 = scalar_select %p64, %s65, %s66
      %p70 = pneg %p64
      %p71 = scmp.eq.s32.totalorder %s15, 1
      %p72 = por %p70, %p71
      %p73 = scmp.ne.s32.totalorder %s65, %s68
      %p74 = scmp.eq.s32.totalorder %s15, 0
      %p75 = por %p73, %p74
      %p76 = scmp.ne.s32.totalorder %s65, %s68
      %p77 = scmp.eq.s32.totalorder %s20, 1
      %p78 = por %p76, %p77
      %p79 = scmp.ne.s32.totalorder %s68, %s69
      %p80 = scmp.eq.s32.totalorder %s20, 0
      %p81 = por %p79, %p80
      %p82 = scmp.ne.s32.totalorder %s68, %s69
      %p83 = scmp.eq.s32.totalorder %s21, 1
      %p84 = por %p82, %p83
      %p86 = scmp.ne.s32.totalorder %s69, %s85
      %p87 = scmp.eq.s32.totalorder %s21, 0
      %p88 = por %p86, %p87
      %s90 = sadd.s32 %s89, 1
      %p93 = scmp.eq.s32.totalorder %s15, 1
      %p94 = scmp.ne.s32.totalorder %s89, %s91
      %p95 = scmp.eq.s32.totalorder %s15, 0
      %p96 = por %p94, %p95
      %p97 = scmp.ne.s32.totalorder %s89, %s91
      %p98 = scmp.eq.s32.totalorder %s20, 1
      %p99 = por %p97, %p98
      %p100 = scmp.ne.s32.totalorder %s91, %s92
      %p101 = scmp.eq.s32.totalorder %s20, 0
      %p102 = por %p100, %p101
      %p103 = scmp.ne.s32.totalorder %s91, %s92
      %p104 = scmp.eq.s32.totalorder %s21, 1
      %p105 = por %p103, %p104
      %p107 = scmp.ne.s32.totalorder %s92, %s106
      %p108 = scmp.eq.s32.totalorder %s21, 0
      %p109 = por %p107, %p108
      %s111 = sadd.s32 %s110, 1
      %p114 = scmp.eq.s32.totalorder %s15, 1
      %p115 = scmp.ne.s32.totalorder %s110, %s112
      %p116 = scmp.eq.s32.totalorder %s15, 0
      %p117 = por %p115, %p116
      %p118 = scmp.ne.s32.totalorder %s110, %s112
      %p119 = scmp.eq.s32.totalorder %s20, 1
      %p120 = por %p118, %p119
      %p121 = scmp.ne.s32.totalorder %s112, %s113
      %p122 = scmp.eq.s32.totalorder %s20, 0
      %p123 = por %p121, %p122
      %p124 = scmp.ne.s32.totalorder %s112, %s113
      %p125 = scmp.eq.s32.totalorder %s21, 1
      %p126 = por %p124, %p125
      %p128 = scmp.ne.s32.totalorder %s113, %s127
      %p129 = scmp.eq.s32.totalorder %s21, 0
      %p130 = por %p128, %p129
      %s132 = sadd.s32 %s131, 1
      %p135 = scmp.eq.s32.totalorder %s15, 1
      %p136 = scmp.ne.s32.totalorder %s131, %s133
      %p137 = scmp.eq.s32.totalorder %s15, 0
      %p138 = por %p136, %p137
      %p139 = scmp.ne.s32.totalorder %s131, %s133
      %p140 = scmp.eq.s32.totalorder %s20, 1
      %p141 = por %p139, %p140
      %p142 = scmp.ne.s32.totalorder %s133, %s134
      %p143 = scmp.eq.s32.totalorder %s20, 0
      %p144 = por %p142, %p143
      %p145 = scmp.ne.s32.totalorder %s133, %s134
      %p146 = scmp.eq.s32.totalorder %s21, 1
      %p147 = por %p145, %p146
      %p149 = scmp.ne.s32.totalorder %s134, %s148
      %p150 = scmp.eq.s32.totalorder %s21, 0
      %p151 = por %p149, %p150
      %s153 = sadd.s32 %s152, 1
      %p156 = scmp.eq.s32.totalorder %s15, 1
      %p157 = scmp.ne.s32.totalorder %s152, %s154
      %p158 = scmp.eq.s32.totalorder %s15, 0
      %p159 = por %p157, %p158
      %p160 = scmp.ne.s32.totalorder %s152, %s154
      %p161 = scmp.eq.s32.totalorder %s20, 1
      %p162 = por %p160, %p161
      %p163 = scmp.ne.s32.totalorder %s154, %s155
      %p164 = scmp.eq.s32.totalorder %s20, 0
      %p165 = por %p163, %p164
      %p166 = scmp.ne.s32.totalorder %s154, %s155
      %p167 = scmp.eq.s32.totalorder %s21, 1
      %p168 = por %p166, %p167
      %p170 = scmp.ne.s32.totalorder %s155, %s169
      %p171 = scmp.eq.s32.totalorder %s21, 0
      %p172 = por %p170, %p171
      %s173 = ssub.s32 %s22, %s34
      %s174 = ssub.s32 %s23, %s30
      %s175 = sor.u32 %s173, %s174
      %p176 = scmp.eq.s32.totalorder %s175, 0
      %s178 = sadd.s32 %s177, 1
      %s179 = scalar_select %p176, %s177, %s178
      %p182 = pneg %p176
      %p183 = scmp.eq.s32.totalorder %s15, 1
      %p184 = por %p182, %p183
      %p185 = scmp.ne.s32.totalorder %s177, %s180
      %p186 = scmp.eq.s32.totalorder %s15, 0
      %p187 = por %p185, %p186
      %p188 = scmp.ne.s32.totalorder %s177, %s180
      %p189 = scmp.eq.s32.totalorder %s20, 1
      %p190 = por %p188, %p189
      %p191 = scmp.ne.s32.totalorder %s180, %s181
      %p192 = scmp.eq.s32.totalorder %s20, 0
      %p193 = por %p191, %p192
      %p194 = scmp.ne.s32.totalorder %s180, %s181
      %p195 = scmp.eq.s32.totalorder %s21, 1
      %p196 = por %p194, %p195
      %p198 = scmp.ne.s32.totalorder %s181, %s197
      %p199 = scmp.eq.s32.totalorder %s21, 0
      %p200 = por %p198, %p199
      %p201 = scmp.le.s32.totalorder 1, %s15
      %p202 = scmp.lt.s32.totalorder %s15, 3
      %p203 = pnand %p201, %p202
      %p204 = pneg %p203
      // Predicated region
      $region9: #{tpu_custom_call.1} parent=5 // pred_check
        _
      $region10: #{tpu_custom_call.1} parent=5 // pred_check_branch
        %206 = sbr.rel (%p203) target = $region12
      $region11: #{tpu_custom_call.1} parent=5 // pred_region
        %s207 = ssub.s32 %s15, 1
        // Predicated region
        $region13: #{tpu_custom_call.1} parent=11 // pred_check
          %p208 = pneg %p102
        $region14: #{tpu_custom_call.1} parent=11 // pred_check_branch
          %210 = sbr.rel (%p208) target = $region16
        $region15: #{tpu_custom_call.1} parent=11 // pred_region
          _
        $region16: #{tpu_custom_call.1} parent=11 // pred_fallthru
          _
        // Predicated region
        $region17: #{tpu_custom_call.1} parent=11 // pred_check
          %p211 = pneg %p123
        $region18: #{tpu_custom_call.1} parent=11 // pred_check_branch
          %213 = sbr.rel (%p211) target = $region20
        $region19: #{tpu_custom_call.1} parent=11 // pred_region
          _
        $region20: #{tpu_custom_call.1} parent=11 // pred_fallthru
          _
        // Predicated region
        $region21: #{tpu_custom_call.1} parent=11 // pred_check
          %p214 = pneg %p144
        $region22: #{tpu_custom_call.1} parent=11 // pred_check_branch
          %216 = sbr.rel (%p214) target = $region24
        $region23: #{tpu_custom_call.1} parent=11 // pred_region
          _
        $region24: #{tpu_custom_call.1} parent=11 // pred_fallthru
          _
        // Predicated region
        $region25: #{tpu_custom_call.1} parent=11 // pred_check
          %p217 = pneg %p165
        $region26: #{tpu_custom_call.1} parent=11 // pred_check_branch
          %219 = sbr.rel (%p217) target = $region28
        $region27: #{tpu_custom_call.1} parent=11 // pred_region
          _
        $region28: #{tpu_custom_call.1} parent=11 // pred_fallthru
          _
      $region12: #{tpu_custom_call.1} parent=5 // pred_fallthru
        _
      %p220 = scmp.lt.s32.totalorder %s15, 2
      // Predicated region
      $region29: #{tpu_custom_call.1} parent=5 // pred_check
        %p221 = pneg %p220
      $region30: #{tpu_custom_call.1} parent=5 // pred_check_branch
        %223 = sbr.rel (%p221) target = $region32
      $region31: #{tpu_custom_call.1} parent=5 // pred_region
        // Predicated region
        $region33: #{tpu_custom_call.1} parent=31 // pred_check
          %p224 = pneg %p49
        $region34: #{tpu_custom_call.1} parent=31 // pred_check_branch
          %226 = sbr.rel (%p224) target = $region36
        $region35: #{tpu_custom_call.1} parent=31 // pred_region
          %p227 = scmp.lt.s32.totalorder %s22, 1
          %s228 = scalar_select %p227, %s22, 1
          %p229 = scmp.lt.s32.totalorder %s23, 0
          %s230 = scalar_select %p229, %s23, 0
          %s231 = sadd.s32 %s230, %s228
          %s232 = smul.addr %s231, 4
          %s233 = scalar_lea.vmem %s0, %s232
        $region36: #{tpu_custom_call.1} parent=31 // pred_fallthru
          _
        // Predicated region
        $region37: #{tpu_custom_call.1} parent=31 // pred_check
          %p234 = pneg %p75
        $region38: #{tpu_custom_call.1} parent=31 // pred_check_branch
          %236 = sbr.rel (%p234) target = $region40
        $region39: #{tpu_custom_call.1} parent=31 // pred_region
          %p237 = scmp.lt.s32.totalorder %s22, 1
          %s238 = scalar_select %p237, %s22, 1
          %s239 = smul.addr %s238, 4
          %s240 = scalar_lea.vmem %s1, %s239
        $region40: #{tpu_custom_call.1} parent=31 // pred_fallthru
          _
      $region32: #{tpu_custom_call.1} parent=5 // pred_fallthru
        _
      %p241 = scmp.le.s32.totalorder 1, %s15
      %p242 = scmp.lt.s32.totalorder %s15, 3
      %p243 = pnand %p241, %p242
      %p244 = pneg %p243
      // Predicated region
      $region41: #{tpu_custom_call.1} parent=5 // pred_check
        _
      $region42: #{tpu_custom_call.1} parent=5 // pred_check_branch
        %246 = sbr.rel (%p243) target = $region44
      $region43: #{tpu_custom_call.1} parent=5 // pred_region
        %s247 = ssub.s32 %s15, 1
        %p248 = scmp.lt.s32.totalorder %s24, 1
        %s249 = scalar_select %p248, %s24, 1
        %p250 = scmp.lt.s32.totalorder %s25, 0
        %s251 = scalar_select %p250, %s25, 0
        %s252 = sadd.s32 %s251, %s249
        %s253 = smul.addr %s252, 4
        %s254 = scalar_lea.vmem %s0, %s253
        %p255 = pneg %p55
        %p256 = pneg %p52
        %p257 = scmp.lt.s32.totalorder %s24, 1
        %s258 = scalar_select %p257, %s24, 1
        %s259 = smul.addr %s258, 4
        %s260 = scalar_lea.vmem %s1, %s259
        %p261 = pneg %p81
        %p262 = pneg %p78
        %p263 = pneg %p102
        %p264 = pneg %p99
        %p265 = pneg %p123
        %p266 = pneg %p120
        %p267 = pneg %p144
        %p268 = pneg %p141
        %p269 = pneg %p165
        %p270 = pneg %p162
        %p271 = pneg %p193
        %p272 = pneg %p190
        %s273 = sand.u32 %s180, 1
        %s274 = scalar_lea.sflag [#allocation3], %s273
        %s275 = sand.u32 %s180, 1
        %s276 = smul.addr %s275, 8
        %s277 = scalar_lea.vmem [#allocation2], %s276
        %p278 = scmp.lt.s32.totalorder %s24, 1
        %s279 = scalar_select %p278, %s24, 1
        %p280 = scmp.lt.s32.totalorder %s25, 0
        %s281 = scalar_select %p280, %s25, 0
        %s282 = sadd.s32 %s281, %s279
        %s283 = smul.addr %s282, 4
        %s284 = scalar_lea.vmem %s0, %s283
        %p285 = scmp.lt.s32.totalorder %s24, 1
        %s286 = scalar_select %p285, %s24, 1
        %s287 = smul.addr %s286, 4
        %s288 = scalar_lea.vmem %s1, %s287
        %v290 = vld [vmem:[%s284] sm:$0xf]
        %v291 = vld [vmem:[%s288] sm:$0xf]
        %v292 = vld [vmem:[%s2] sm:$0xf]
        %v293 = vld [vmem:[%s2 + $0x4] sm:$0xf]
        %v294 = vld [vmem:[%s2 + $0x8] sm:$0xf]
        %v295 = vld [vmem:[%s2 + $0xc] sm:$0xf]
        %v296 = vld [vmem:[%s2 + $0x10] sm:$0xf]
        %v297 = vld [vmem:[%s2 + $0x14] sm:$0xf]
        %v298 = vld [vmem:[%s2 + $0x18] sm:$0xf]
        %v299 = vld [vmem:[%s2 + $0x1c] sm:$0xf]
        %v300 = vld [vmem:[%s2 + $0x20] sm:$0xf]
        %v301 = vld [vmem:[%s2 + $0x24] sm:$0xf]
        %v302 = vld [vmem:[%s2 + $0x28] sm:$0xf]
        %v303 = vld [vmem:[%s2 + $0x2c] sm:$0xf]
        %v304 = vld [vmem:[%s2 + $0x30] sm:$0xf]
        %v305 = vld [vmem:[%s2 + $0x34] sm:$0xf]
        %v306 = vld [vmem:[%s2 + $0x38] sm:$0xf]
        %v307 = vld [vmem:[%s2 + $0x3c] sm:$0xf]
        %s308 = scalar_lea.vmem %s2, 64
        %v309 = vld [vmem:[%s308] sm:$0xf]
        %v310 = vld [vmem:[%s308 + $0x4] sm:$0xf]
        %v311 = vld [vmem:[%s308 + $0x8] sm:$0xf]
        %v312 = vld [vmem:[%s308 + $0xc] sm:$0xf]
        %v313 = vld [vmem:[%s308 + $0x10] sm:$0xf]
        %v314 = vld [vmem:[%s308 + $0x14] sm:$0xf]
        %v315 = vld [vmem:[%s308 + $0x18] sm:$0xf]
        %v316 = vld [vmem:[%s308 + $0x1c] sm:$0xf]
        %v317 = vld [vmem:[%s308 + $0x20] sm:$0xf]
        %v318 = vld [vmem:[%s308 + $0x24] sm:$0xf]
        %v319 = vld [vmem:[%s308 + $0x28] sm:$0xf]
        %v320 = vld [vmem:[%s308 + $0x2c] sm:$0xf]
        %v321 = vld [vmem:[%s308 + $0x30] sm:$0xf]
        %v322 = vld [vmem:[%s308 + $0x34] sm:$0xf]
        %v323 = vld [vmem:[%s308 + $0x38] sm:$0xf]
        %v324 = vld [vmem:[%s308 + $0x3c] sm:$0xf]
        %s325 = scalar_lea.vmem %s2, 128
        %v326 = vld [vmem:[%s325] sm:$0xf]
        %v327 = vld [vmem:[%s325 + $0x4] sm:$0xf]
        %v328 = vld [vmem:[%s325 + $0x8] sm:$0xf]
        %v329 = vld [vmem:[%s325 + $0xc] sm:$0xf]
        %v330 = vld [vmem:[%s325 + $0x10] sm:$0xf]
        %v331 = vld [vmem:[%s325 + $0x14] sm:$0xf]
        %v332 = vld [vmem:[%s325 + $0x18] sm:$0xf]
        %v333 = vld [vmem:[%s325 + $0x1c] sm:$0xf]
        %v334 = vld [vmem:[%s325 + $0x20] sm:$0xf]
        %v335 = vld [vmem:[%s325 + $0x24] sm:$0xf]
        %v336 = vld [vmem:[%s325 + $0x28] sm:$0xf]
        %v337 = vld [vmem:[%s325 + $0x2c] sm:$0xf]
        %v338 = vld [vmem:[%s325 + $0x30] sm:$0xf]
        %v339 = vld [vmem:[%s325 + $0x34] sm:$0xf]
        %v340 = vld [vmem:[%s325 + $0x38] sm:$0xf]
        %v341 = vld [vmem:[%s325 + $0x3c] sm:$0xf]
        %v342 = vld [vmem:[%s3] sm:$0x1]
        %v343 = vld [vmem:[%s3 + $0x1] sm:$0x1]
        %v344 = vld [vmem:[%s3 + $0x2] sm:$0x1]
        %v345 = vld [vmem:[%s3 + $0x3] sm:$0x1]
        %s346 = scalar_lea.vmem %s3, 4
        %v347 = vld [vmem:[%s346] sm:$0x1]
        %v348 = vld [vmem:[%s346 + $0x1] sm:$0x1]
        %v349 = vld [vmem:[%s346 + $0x2] sm:$0x1]
        %v350 = vld [vmem:[%s346 + $0x3] sm:$0x1]
        %s351 = scalar_lea.vmem %s3, 8
        %v352 = vld [vmem:[%s351] sm:$0x1]
        %v353 = vld [vmem:[%s351 + $0x1] sm:$0x1]
        %v354 = vld [vmem:[%s351 + $0x2] sm:$0x1]
        %v355 = vld [vmem:[%s351 + $0x3] sm:$0x1]
        %v360 = vperm.slane %v342, 0
        %v361 = vperm.slane %v343, 0
        %v362 = vperm.slane %v344, 0
        %v363 = vperm.slane %v345, 0
        %v372 = vunpack.c.l.b16 %v292
        %v373 = vunpack.c.l.b16 %v293
        %v374 = vunpack.c.l.b16 %v294
        %v375 = vunpack.c.l.b16 %v295
        %v376 = vpack.c.b16 %v373, %v372
        %v377 = vpack.c.b16 %v375, %v374
        %vm380 = vcmask 261120
        %v382 = vsel %vm380, %v290, 0
        %384 = vmatpush.bf16.msra.mxu0 0
        %385 = vmatpush.bf16.msra.mxu0 0
        %386 = vmatpush.bf16.msra.mxu0 0
        %387 = vmatpush.bf16.msra.mxu0 0
        %388 = vmatpush.bf16.msra.mxu0 0
        %389 = vmatpush.bf16.msra.mxu0 0
        %390 = vmatpush.bf16.msra.mxu0 %v377
        %391 = vmatpush.bf16.msra.mxu0 %v376
        %392 = vmatmul.bf16.gmra.mxu0 %v382
        %v393 = vpop.f32.mrf.mxu0
        %v394 = vadd.f32 %v360, %v393
        %v395 = vpop.f32.mrf.mxu0
        %396 = vdwg.mxu0
        %v401 = vunpack.c.l.b16 %v296
        %v402 = vunpack.c.l.b16 %v297
        %v403 = vunpack.c.l.b16 %v298
        %v404 = vunpack.c.l.b16 %v299
        %v405 = vpack.c.b16 %v402, %v401
        %v406 = vpack.c.b16 %v404, %v403
        %409 = vmatpush.bf16.msra.mxu0 0
        %410 = vmatpush.bf16.msra.mxu0 0
        %411 = vmatpush.bf16.msra.mxu0 0
        %412 = vmatpush.bf16.msra.mxu0 0
        %413 = vmatpush.bf16.msra.mxu0 0
        %414 = vmatpush.bf16.msra.mxu0 0
        %415 = vmatpush.bf16.msra.mxu0 %v406
        %416 = vmatpush.bf16.msra.mxu0 %v405
        %417 = vmatmul.bf16.gmra.mxu0 %v382
        %v418 = vpop.f32.mrf.mxu0
        %v419 = vadd.f32 %v361, %v418
        %v420 = vpop.f32.mrf.mxu0
        %421 = vdwg.mxu0
        %v426 = vunpack.c.l.b16 %v300
        %v427 = vunpack.c.l.b16 %v301
        %v428 = vunpack.c.l.b16 %v302
        %v429 = vunpack.c.l.b16 %v303
        %v430 = vpack.c.b16 %v427, %v426
        %v431 = vpack.c.b16 %v429, %v428
        %434 = vmatpush.bf16.msra.mxu0 0
        %435 = vmatpush.bf16.msra.mxu0 0
        %436 = vmatpush.bf16.msra.mxu0 0
        %437 = vmatpush.bf16.msra.mxu0 0
        %438 = vmatpush.bf16.msra.mxu0 0
        %439 = vmatpush.bf16.msra.mxu0 0
        %440 = vmatpush.bf16.msra.mxu0 %v431
        %441 = vmatpush.bf16.msra.mxu0 %v430
        %442 = vmatmul.bf16.gmra.mxu0 %v382
        %v443 = vpop.f32.mrf.mxu0
        %v444 = vadd.f32 %v362, %v443
        %v445 = vpop.f32.mrf.mxu0
        %446 = vdwg.mxu0
        %v451 = vunpack.c.l.b16 %v304
        %v452 = vunpack.c.l.b16 %v305
        %v453 = vunpack.c.l.b16 %v306
        %v454 = vunpack.c.l.b16 %v307
        %v455 = vpack.c.b16 %v452, %v451
        %v456 = vpack.c.b16 %v454, %v453
        %459 = vmatpush.bf16.msra.mxu0 0
        %460 = vmatpush.bf16.msra.mxu0 0
        %461 = vmatpush.bf16.msra.mxu0 0
        %462 = vmatpush.bf16.msra.mxu0 0
        %463 = vmatpush.bf16.msra.mxu0 0
        %464 = vmatpush.bf16.msra.mxu0 0
        %465 = vmatpush.bf16.msra.mxu0 %v456
        %466 = vmatpush.bf16.msra.mxu0 %v455
        %467 = vmatmul.bf16.gmra.mxu0 %v382
        %v468 = vpop.f32.mrf.mxu0
        %v469 = vadd.f32 %v363, %v468
        %v470 = vpop.f32.mrf.mxu0
        %471 = vdwg.mxu0
        %v476 = vperm.slane %v347, 0
        %v477 = vperm.slane %v348, 0
        %v478 = vperm.slane %v349, 0
        %v479 = vperm.slane %v350, 0
        %v488 = vunpack.c.l.b16 %v309
        %v489 = vunpack.c.l.b16 %v310
        %v490 = vunpack.c.l.b16 %v311
        %v491 = vunpack.c.l.b16 %v312
        %v492 = vpack.c.b16 %v489, %v488
        %v493 = vpack.c.b16 %v491, %v490
        %v497 = vsel %vm380, %v291, 0
        %499 = vmatpush.bf16.msra.mxu0 0
        %500 = vmatpush.bf16.msra.mxu0 0
        %501 = vmatpush.bf16.msra.mxu0 0
        %502 = vmatpush.bf16.msra.mxu0 0
        %503 = vmatpush.bf16.msra.mxu0 0
        %504 = vmatpush.bf16.msra.mxu0 0
        %505 = vmatpush.bf16.msra.mxu0 %v493
        %506 = vmatpush.bf16.msra.mxu0 %v492
        %507 = vmatmul.bf16.gmra.mxu0 %v497
        %v508 = vpop.f32.mrf.mxu0
        %v509 = vadd.f32 %v476, %v508
        %v510 = vpop.f32.mrf.mxu0
        %511 = vdwg.mxu0
        %v516 = vunpack.c.l.b16 %v313
        %v517 = vunpack.c.l.b16 %v314
        %v518 = vunpack.c.l.b16 %v315
        %v519 = vunpack.c.l.b16 %v316
        %v520 = vpack.c.b16 %v517, %v516
        %v521 = vpack.c.b16 %v519, %v518
        %524 = vmatpush.bf16.msra.mxu0 0
        %525 = vmatpush.bf16.msra.mxu0 0
        %526 = vmatpush.bf16.msra.mxu0 0
        %527 = vmatpush.bf16.msra.mxu0 0
        %528 = vmatpush.bf16.msra.mxu0 0
        %529 = vmatpush.bf16.msra.mxu0 0
        %530 = vmatpush.bf16.msra.mxu0 %v521
        %531 = vmatpush.bf16.msra.mxu0 %v520
        %532 = vmatmul.bf16.gmra.mxu0 %v497
        %v533 = vpop.f32.mrf.mxu0
        %v534 = vadd.f32 %v477, %v533
        %v535 = vpop.f32.mrf.mxu0
        %536 = vdwg.mxu0
        %v541 = vunpack.c.l.b16 %v317
        %v542 = vunpack.c.l.b16 %v318
        %v543 = vunpack.c.l.b16 %v319
        %v544 = vunpack.c.l.b16 %v320
        %v545 = vpack.c.b16 %v542, %v541
        %v546 = vpack.c.b16 %v544, %v543
        %549 = vmatpush.bf16.msra.mxu0 0
        %550 = vmatpush.bf16.msra.mxu0 0
        %551 = vmatpush.bf16.msra.mxu0 0
        %552 = vmatpush.bf16.msra.mxu0 0
        %553 = vmatpush.bf16.msra.mxu0 0
        %554 = vmatpush.bf16.msra.mxu0 0
        %555 = vmatpush.bf16.msra.mxu0 %v546
        %556 = vmatpush.bf16.msra.mxu0 %v545
        %557 = vmatmul.bf16.gmra.mxu0 %v497
        %v558 = vpop.f32.mrf.mxu0
        %v559 = vadd.f32 %v478, %v558
        %v560 = vpop.f32.mrf.mxu0
        %561 = vdwg.mxu0
        %v566 = vunpack.c.l.b16 %v321
        %v567 = vunpack.c.l.b16 %v322
        %v568 = vunpack.c.l.b16 %v323
        %v569 = vunpack.c.l.b16 %v324
        %v570 = vpack.c.b16 %v567, %v566
        %v571 = vpack.c.b16 %v569, %v568
        %574 = vmatpush.bf16.msra.mxu0 0
        %575 = vmatpush.bf16.msra.mxu0 0
        %576 = vmatpush.bf16.msra.mxu0 0
        %577 = vmatpush.bf16.msra.mxu0 0
        %578 = vmatpush.bf16.msra.mxu0 0
        %579 = vmatpush.bf16.msra.mxu0 0
        %580 = vmatpush.bf16.msra.mxu0 %v571
        %581 = vmatpush.bf16.msra.mxu0 %v570
        %582 = vmatmul.bf16.gmra.mxu0 %v497
        %v583 = vpop.f32.mrf.mxu0
        %v584 = vadd.f32 %v479, %v583
        %v585 = vpop.f32.mrf.mxu0
        %586 = vdwg.mxu0
        %v591 = vperm.slane %v352, 0
        %v592 = vperm.slane %v353, 0
        %v593 = vperm.slane %v354, 0
        %v594 = vperm.slane %v355, 0
        %v603 = vunpack.c.l.b16 %v326
        %v604 = vunpack.c.l.b16 %v327
        %v605 = vunpack.c.l.b16 %v328
        %v606 = vunpack.c.l.b16 %v329
        %v607 = vpack.c.b16 %v604, %v603
        %v608 = vpack.c.b16 %v606, %v605
        %611 = vmatpush.bf16.msra.mxu0 0
        %612 = vmatpush.bf16.msra.mxu0 0
        %613 = vmatpush.bf16.msra.mxu0 0
        %614 = vmatpush.bf16.msra.mxu0 0
        %615 = vmatpush.bf16.msra.mxu0 0
        %616 = vmatpush.bf16.msra.mxu0 0
        %617 = vmatpush.bf16.msra.mxu0 %v608
        %618 = vmatpush.bf16.msra.mxu0 %v607
        %619 = vmatmul.bf16.gmra.mxu0 %v497
        %v620 = vpop.f32.mrf.mxu0
        %v621 = vadd.f32 %v591, %v620
        %v622 = vpop.f32.mrf.mxu0
        %623 = vdwg.mxu0
        %v628 = vunpack.c.l.b16 %v330
        %v629 = vunpack.c.l.b16 %v331
        %v630 = vunpack.c.l.b16 %v332
        %v631 = vunpack.c.l.b16 %v333
        %v632 = vpack.c.b16 %v629, %v628
        %v633 = vpack.c.b16 %v631, %v630
        %636 = vmatpush.bf16.msra.mxu0 0
        %637 = vmatpush.bf16.msra.mxu0 0
        %638 = vmatpush.bf16.msra.mxu0 0
        %639 = vmatpush.bf16.msra.mxu0 0
        %640 = vmatpush.bf16.msra.mxu0 0
        %641 = vmatpush.bf16.msra.mxu0 0
        %642 = vmatpush.bf16.msra.mxu0 %v633
        %643 = vmatpush.bf16.msra.mxu0 %v632
        %644 = vmatmul.bf16.gmra.mxu0 %v497
        %v645 = vpop.f32.mrf.mxu0
        %v646 = vadd.f32 %v592, %v645
        %v647 = vpop.f32.mrf.mxu0
        %648 = vdwg.mxu0
        %v653 = vunpack.c.l.b16 %v334
        %v654 = vunpack.c.l.b16 %v335
        %v655 = vunpack.c.l.b16 %v336
        %v656 = vunpack.c.l.b16 %v337
        %v657 = vpack.c.b16 %v654, %v653
        %v658 = vpack.c.b16 %v656, %v655
        %661 = vmatpush.bf16.msra.mxu0 0
        %662 = vmatpush.bf16.msra.mxu0 0
        %663 = vmatpush.bf16.msra.mxu0 0
        %664 = vmatpush.bf16.msra.mxu0 0
        %665 = vmatpush.bf16.msra.mxu0 0
        %666 = vmatpush.bf16.msra.mxu0 0
        %667 = vmatpush.bf16.msra.mxu0 %v658
        %668 = vmatpush.bf16.msra.mxu0 %v657
        %669 = vmatmul.bf16.gmra.mxu0 %v497
        %v670 = vpop.f32.mrf.mxu0
        %v671 = vadd.f32 %v593, %v670
        %v672 = vpop.f32.mrf.mxu0
        %673 = vdwg.mxu0
        %v678 = vunpack.c.l.b16 %v338
        %v679 = vunpack.c.l.b16 %v339
        %v680 = vunpack.c.l.b16 %v340
        %v681 = vunpack.c.l.b16 %v341
        %v682 = vpack.c.b16 %v679, %v678
        %v683 = vpack.c.b16 %v681, %v680
        %686 = vmatpush.bf16.msra.mxu0 0
        %687 = vmatpush.bf16.msra.mxu0 0
        %688 = vmatpush.bf16.msra.mxu0 0
        %689 = vmatpush.bf16.msra.mxu0 0
        %690 = vmatpush.bf16.msra.mxu0 0
        %691 = vmatpush.bf16.msra.mxu0 0
        %692 = vmatpush.bf16.msra.mxu0 %v683
        %693 = vmatpush.bf16.msra.mxu0 %v682
        %694 = vmatmul.bf16.gmra.mxu0 %v497
        %v695 = vpop.f32.mrf.mxu0
        %v696 = vadd.f32 %v594, %v695
        %v697 = vpop.f32.mrf.mxu0
        %698 = vdwg.mxu0
        %v699 = vmul.f32 %v394, 0.35355338
        %v700 = vmul.f32 %v419, 0.35355338
        %v701 = vmul.f32 %v444, 0.35355338
        %v702 = vmul.f32 %v469, 0.35355338
        %v703 = vpack.c.bf16 %v699, %v699
        %v704 = vpack.c.bf16 %v700, %v700
        %v705 = vpack.c.bf16 %v701, %v701
        %v706 = vpack.c.bf16 %v702, %v702
        %v707 = vpack.c.bf16 %v509, %v509
        %v708 = vpack.c.bf16 %v534, %v534
        %v709 = vpack.c.bf16 %v559, %v559
        %v710 = vpack.c.bf16 %v584, %v584
        %v711 = vpack.c.bf16 %v621, %v621
        %v712 = vpack.c.bf16 %v646, %v646
        %v713 = vpack.c.bf16 %v671, %v671
        %v714 = vpack.c.bf16 %v696, %v696
        %vm715 = vcmask 64512
        %v717 = vsel %vm715, %v703, 0
        %v720 = vsel %vm715, %v707, 0
        %722 = vmatpush.bf16.xpose.msra.mxu0 0
        %723 = vmatpush.bf16.xpose.msra.mxu0 0
        %724 = vmatpush.bf16.xpose.msra.mxu0 0
        %725 = vmatpush.bf16.xpose.msra.mxu0 0
        %726 = vmatpush.bf16.xpose.msra.mxu0 0
        %727 = vmatpush.bf16.xpose.msra.mxu0 0
        %728 = vmatpush.bf16.xpose.msra.mxu0 0
        %729 = vmatpush.bf16.xpose.msra.mxu0 %v720
        %730 = vmatmul.bf16.gmra.mxu0 %v717
        %v731 = vpop.f32.mrf.mxu0
        %v732 = vadd.f32 0.0, %v731
        %v733 = vpop.f32.mrf.mxu0
        %734 = vdwg.mxu0
        %v736 = vsel %vm715, %v704, 0
        %v739 = vsel %vm715, %v708, 0
        %741 = vmatpush.bf16.xpose.msra.mxu0 0
        %742 = vmatpush.bf16.xpose.msra.mxu0 0
        %743 = vmatpush.bf16.xpose.msra.mxu0 0
        %744 = vmatpush.bf16.xpose.msra.mxu0 0
        %745 = vmatpush.bf16.xpose.msra.mxu0 0
        %746 = vmatpush.bf16.xpose.msra.mxu0 0
        %747 = vmatpush.bf16.xpose.msra.mxu0 0
        %748 = vmatpush.bf16.xpose.msra.mxu0 %v739
        %749 = vmatmul.bf16.gmra.mxu0 %v736
        %v750 = vpop.f32.mrf.mxu0
        %v751 = vadd.f32 0.0, %v750
        %v752 = vpop.f32.mrf.mxu0
        %753 = vdwg.mxu0
        %v755 = vsel %vm715, %v705, 0
        %v758 = vsel %vm715, %v709, 0
        %760 = vmatpush.bf16.xpose.msra.mxu0 0
        %761 = vmatpush.bf16.xpose.msra.mxu0 0
        %762 = vmatpush.bf16.xpose.msra.mxu0 0
        %763 = vmatpush.bf16.xpose.msra.mxu0 0
        %764 = vmatpush.bf16.xpose.msra.mxu0 0
        %765 = vmatpush.bf16.xpose.msra.mxu0 0
        %766 = vmatpush.bf16.xpose.msra.mxu0 0
        %767 = vmatpush.bf16.xpose.msra.mxu0 %v758
        %768 = vmatmul.bf16.gmra.mxu0 %v755
        %v769 = vpop.f32.mrf.mxu0
        %v770 = vadd.f32 0.0, %v769
        %v771 = vpop.f32.mrf.mxu0
        %772 = vdwg.mxu0
        %v774 = vsel %vm715, %v706, 0
        %v777 = vsel %vm715, %v710, 0
        %779 = vmatpush.bf16.xpose.msra.mxu0 0
        %780 = vmatpush.bf16.xpose.msra.mxu0 0
        %781 = vmatpush.bf16.xpose.msra.mxu0 0
        %782 = vmatpush.bf16.xpose.msra.mxu0 0
        %783 = vmatpush.bf16.xpose.msra.mxu0 0
        %784 = vmatpush.bf16.xpose.msra.mxu0 0
        %785 = vmatpush.bf16.xpose.msra.mxu0 0
        %786 = vmatpush.bf16.xpose.msra.mxu0 %v777
        %787 = vmatmul.bf16.gmra.mxu0 %v774
        %v788 = vpop.f32.mrf.mxu0
        %v789 = vadd.f32 0.0, %v788
        %v790 = vpop.f32.mrf.mxu0
        %791 = vdwg.mxu0
        %v792 = vsel %vm715, %v732, -inf
        %793 = vmax.xlane.f32.xlu0 %v792
        %v794 = vpop.xlane.xlu0 %793
        %v795 = vsel %vm715, %v751, -inf
        %796 = vmax.xlane.f32.xlu0 %v795
        %v797 = vpop.xlane.xlu0 %796
        %v798 = vsel %vm715, %v770, -inf
        %799 = vmax.xlane.f32.xlu0 %v798
        %v800 = vpop.xlane.xlu0 %799
        %v801 = vsel %vm715, %v789, -inf
        %802 = vmax.xlane.f32.xlu0 %v801
        %v803 = vpop.xlane.xlu0 %802
        %v804 = vsub.f32 %v732, %v794
        %v805 = vsub.f32 %v751, %v797
        %v806 = vsub.f32 %v770, %v800
        %v807 = vsub.f32 %v789, %v803
        %v808 = vmul.f32 %v804, 1.442695
        %v809 = vpow.pop %v808
        %v810 = vmul.f32 %v805, 1.442695
        %v811 = vpow.pop %v810
        %v812 = vmul.f32 %v806, 1.442695
        %v813 = vpow.pop %v812
        %v814 = vmul.f32 %v807, 1.442695
        %v815 = vpow.pop %v814
        %v816 = vsel %vm715, %v809, 0.0
        %817 = vadd.xlane.f32.xlu0 %v816
        %v818 = vpop.xlane.xlu0 %817
        %v819 = vsel %vm715, %v811, 0.0
        %820 = vadd.xlane.f32.xlu0 %v819
        %v821 = vpop.xlane.xlu0 %820
        %v822 = vsel %vm715, %v813, 0.0
        %823 = vadd.xlane.f32.xlu0 %v822
        %v824 = vpop.xlane.xlu0 %823
        %v825 = vsel %vm715, %v815, 0.0
        %826 = vadd.xlane.f32.xlu0 %v825
        %v827 = vpop.xlane.xlu0 %826
        %v828 = vpack.c.bf16 %v809, %v809
        %v829 = vpack.c.bf16 %v811, %v811
        %v830 = vpack.c.bf16 %v813, %v813
        %v831 = vpack.c.bf16 %v815, %v815
        %v833 = vsel %vm715, %v828, 0
        %vm835 = vcmask 1043456
        %v837 = vsel %vm835, %v711, 0
        %839 = vmatpush.bf16.msra.mxu0 0
        %840 = vmatpush.bf16.msra.mxu0 0
        %841 = vmatpush.bf16.msra.mxu0 0
        %842 = vmatpush.bf16.msra.mxu0 0
        %843 = vmatpush.bf16.msra.mxu0 0
        %844 = vmatpush.bf16.msra.mxu0 0
        %845 = vmatpush.bf16.msra.mxu0 0
        %846 = vmatpush.bf16.msra.mxu0 %v837
        %847 = vmatmul.bf16.gmra.mxu0 %v833
        %v848 = vpop.f32.mrf.mxu0
        %v849 = vadd.f32 0.0, %v848
        %v850 = vpop.f32.mrf.mxu0
        %851 = vdwg.mxu0
        %v853 = vsel %vm715, %v829, 0
        %v856 = vsel %vm835, %v712, 0
        %858 = vmatpush.bf16.msra.mxu0 0
        %859 = vmatpush.bf16.msra.mxu0 0
        %860 = vmatpush.bf16.msra.mxu0 0
        %861 = vmatpush.bf16.msra.mxu0 0
        %862 = vmatpush.bf16.msra.mxu0 0
        %863 = vmatpush.bf16.msra.mxu0 0
        %864 = vmatpush.bf16.msra.mxu0 0
        %865 = vmatpush.bf16.msra.mxu0 %v856
        %866 = vmatmul.bf16.gmra.mxu0 %v853
        %v867 = vpop.f32.mrf.mxu0
        %v868 = vadd.f32 0.0, %v867
        %v869 = vpop.f32.mrf.mxu0
        %870 = vdwg.mxu0
        %v872 = vsel %vm715, %v830, 0
        %v875 = vsel %vm835, %v713, 0
        %877 = vmatpush.bf16.msra.mxu0 0
        %878 = vmatpush.bf16.msra.mxu0 0
        %879 = vmatpush.bf16.msra.mxu0 0
        %880 = vmatpush.bf16.msra.mxu0 0
        %881 = vmatpush.bf16.msra.mxu0 0
        %882 = vmatpush.bf16.msra.mxu0 0
        %883 = vmatpush.bf16.msra.mxu0 0
        %884 = vmatpush.bf16.msra.mxu0 %v875
        %885 = vmatmul.bf16.gmra.mxu0 %v872
        %v886 = vpop.f32.mrf.mxu0
        %v887 = vadd.f32 0.0, %v886
        %v888 = vpop.f32.mrf.mxu0
        %889 = vdwg.mxu0
        %v891 = vsel %vm715, %v831, 0
        %v894 = vsel %vm835, %v714, 0
        %896 = vmatpush.bf16.msra.mxu0 0
        %897 = vmatpush.bf16.msra.mxu0 0
        %898 = vmatpush.bf16.msra.mxu0 0
        %899 = vmatpush.bf16.msra.mxu0 0
        %900 = vmatpush.bf16.msra.mxu0 0
        %901 = vmatpush.bf16.msra.mxu0 0
        %902 = vmatpush.bf16.msra.mxu0 0
        %903 = vmatpush.bf16.msra.mxu0 %v894
        %904 = vmatmul.bf16.gmra.mxu0 %v891
        %v905 = vpop.f32.mrf.mxu0
        %v906 = vadd.f32 0.0, %v905
        %v907 = vpop.f32.mrf.mxu0
        %908 = vdwg.mxu0
        %v909 = vrcp.pop %v818
        %v910 = vrcp.pop %v821
        %v911 = vrcp.pop %v824
        %v912 = vrcp.pop %v827
        %v913 = vmul.f32 %v849, %v909
        %v914 = vmul.f32 %v868, %v910
        %v915 = vmul.f32 %v887, %v911
        %v916 = vmul.f32 %v906, %v912
        %v917 = vpack.c.bf16 %v913, %v913
        %v918 = vpack.c.bf16 %v914, %v914
        %v919 = vpack.c.bf16 %v915, %v915
        %v920 = vpack.c.bf16 %v916, %v916
        %v921 = vld [vmem:[%s4] sm:$0xf]
        %v922 = vld [vmem:[%s4 + $0x4] sm:$0xf]
        %v923 = vld [vmem:[%s4 + $0x8] sm:$0xf]
        %v924 = vld [vmem:[%s4 + $0xc] sm:$0xf]
        %v926 = vsel %vm715, %v917, 0
        %v929 = vsel %vm835, %v921, 0
        %931 = vmatpush.bf16.msra.mxu0 0
        %932 = vmatpush.bf16.msra.mxu0 0
        %933 = vmatpush.bf16.msra.mxu0 0
        %934 = vmatpush.bf16.msra.mxu0 0
        %935 = vmatpush.bf16.msra.mxu0 0
        %936 = vmatpush.bf16.msra.mxu0 0
        %937 = vmatpush.bf16.msra.mxu0 0
        %938 = vmatpush.bf16.msra.mxu0 %v929
        %939 = vmatmul.bf16.gmra.mxu0 %v926
        %v940 = vpop.f32.mrf.mxu0
        %v941 = vadd.f32 0.0, %v940
        %v942 = vpop.f32.mrf.mxu0
        %943 = vdwg.mxu0
        %v945 = vsel %vm715, %v918, 0
        %v948 = vsel %vm835, %v922, 0
        %950 = vmatpush.bf16.msra.mxu0 0
        %951 = vmatpush.bf16.msra.mxu0 0
        %952 = vmatpush.bf16.msra.mxu0 0
        %953 = vmatpush.bf16.msra.mxu0 0
        %954 = vmatpush.bf16.msra.mxu0 0
        %955 = vmatpush.bf16.msra.mxu0 0
        %956 = vmatpush.bf16.msra.mxu0 0
        %957 = vmatpush.bf16.msra.mxu0 %v948
        %958 = vmatmul.bf16.gmra.mxu0 %v945
        %v959 = vpop.f32.mrf.mxu0
        %v960 = vadd.f32 0.0, %v959
        %v961 = vpop.f32.mrf.mxu0
        %962 = vdwg.mxu0
        %v964 = vsel %vm715, %v919, 0
        %v967 = vsel %vm835, %v923, 0
        %969 = vmatpush.bf16.msra.mxu0 0
        %970 = vmatpush.bf16.msra.mxu0 0
        %971 = vmatpush.bf16.msra.mxu0 0
        %972 = vmatpush.bf16.msra.mxu0 0
        %973 = vmatpush.bf16.msra.mxu0 0
        %974 = vmatpush.bf16.msra.mxu0 0
        %975 = vmatpush.bf16.msra.mxu0 0
        %976 = vmatpush.bf16.msra.mxu0 %v967
        %977 = vmatmul.bf16.gmra.mxu0 %v964
        %v978 = vpop.f32.mrf.mxu0
        %v979 = vadd.f32 0.0, %v978
        %v980 = vpop.f32.mrf.mxu0
        %981 = vdwg.mxu0
        %v983 = vsel %vm715, %v920, 0
        %v986 = vsel %vm835, %v924, 0
        %988 = vmatpush.bf16.msra.mxu0 0
        %989 = vmatpush.bf16.msra.mxu0 0
        %990 = vmatpush.bf16.msra.mxu0 0
        %991 = vmatpush.bf16.msra.mxu0 0
        %992 = vmatpush.bf16.msra.mxu0 0
        %993 = vmatpush.bf16.msra.mxu0 0
        %994 = vmatpush.bf16.msra.mxu0 0
        %995 = vmatpush.bf16.msra.mxu0 %v986
        %996 = vmatmul.bf16.gmra.mxu0 %v983
        %v997 = vpop.f32.mrf.mxu0
        %v998 = vadd.f32 0.0, %v997
        %v999 = vpop.f32.mrf.mxu0
        %1000 = vdwg.mxu0
        %v1001 = vsel %vm380, %v941, 0.0
        %v1002 = vsel %vm380, %v960, 0.0
        %v1003 = vadd.f32 %v1001, %v1002
        %v1004 = vsel %vm380, %v979, 0.0
        %v1005 = vadd.f32 %v1003, %v1004
        %v1006 = vsel %vm380, %v998, 0.0
        %v1007 = vadd.f32 %v1005, %v1006
        %v1008 = vld [vmem:[%s5] sm:$0x1]
        %v1010 = vperm.slane %v1008, 0
        %v1012 = vadd.f32 %v1007, %v1010
        %1013 = vst.msk [vmem:[%s277] sm:$0xff] %vm380, %v1012
        %s1014 = sand.u32 %s180, 1
        %s1015 = scalar_lea.sflag [#allocation3], %s1014
        %s1016 = sand.u32 %s180, 1
        %s1017 = smul.addr %s1016, 8
        %s1018 = scalar_lea.vmem [#allocation2], %s1017
        // Predicated region
        $region45: #{tpu_custom_call.1} parent=43 // pred_check
          %p1019 = pneg %p190
        $region46: #{tpu_custom_call.1} parent=43 // pred_check_branch
          %1021 = sbr.rel (%p1019) target = $region48
        $region47: #{tpu_custom_call.1} parent=43 // pred_region
          %1023 = vsyncadd %s1015, 0
          %s1024 = sadd.s32 %s25, %s24
          %s1025 = smul.addr %s1024, 8
          %s1026 = scalar_lea.hbm %s6, %s1025
          %s1028 = sshll.u32 %s1018, 4
          %s1029 = int_to_ptr.vmem [resolvable:$true] %s1028
          %s1030 = sshll.u32 %s1026, 4
          %s1031 = int_to_ptr.hbm [resolvable:$true] %s1030
          %1033 = dma.vmem_to_hbm [thread:$0]  %s1029, 128, %s1031, %s1015
        $region48: #{tpu_custom_call.1} parent=43 // pred_fallthru
          _
      $region44: #{tpu_custom_call.1} parent=5 // pred_fallthru
        _
      %p1034 = scmp.le.s32.totalorder 2, %s15
      // Predicated region
      $region49: #{tpu_custom_call.1} parent=5 // pred_check
        %p1035 = pneg %p1034
      $region50: #{tpu_custom_call.1} parent=5 // pred_check_branch
        %1037 = sbr.rel (%p1035) target = $region52
      $region51: #{tpu_custom_call.1} parent=5 // pred_region
        %s1038 = ssub.s32 %s15, 2
        // Predicated region
        $region53: #{tpu_custom_call.1} parent=51 // pred_check
          %p1039 = pneg %p196
        $region54: #{tpu_custom_call.1} parent=51 // pred_check_branch
          %1041 = sbr.rel (%p1039) target = $region56
        $region55: #{tpu_custom_call.1} parent=51 // pred_region
          %s1042 = sand.u32 %s181, 1
          %s1043 = scalar_lea.sflag [#allocation3], %s1042
          %s1044 = sand.u32 %s181, 1
          %s1045 = smul.addr %s1044, 8
          %s1046 = scalar_lea.vmem [#allocation2], %s1045
          %1048 = dma.done %s1043, 128
        $region56: #{tpu_custom_call.1} parent=51 // pred_fallthru
          _
      $region52: #{tpu_custom_call.1} parent=5 // pred_fallthru
        _
    $region6: #{tpu_custom_call.1} parent=1 // loop_footer
      %s19 = sadd.s32 1, %s15
    $region7: #{tpu_custom_call.1} parent=1 // loop_footer_branch
      %14 = sbr.rel target = $region3
    $region8: #{tpu_custom_call.1} parent=1 // loop_exit
      _
    %1049 = vsyncpa [#allocation3], 1
    %s1050 = scalar_lea.sflag [#allocation3], 1
    %1051 = vsyncpa %s1050, 1

</llo_original>
